<compile_context>
chip_gen: v7x
topology: tpu7x:2x2x1
jax: 0.10.0
libtpu: 0.0.40
codegen_flags: <defaults>
</compile_context>

<pallas_src>
import functools

import jax
import jax.numpy as jnp
from jax.experimental import pallas as pl
from jax.experimental.pallas import tpu as pltpu


def _round_up(v, m):
    return (v + m - 1) // m * m


def _cdiv(a, b):
    return (a + b - 1) // b


def _vmem_capacity_bytes():
    try:
        return int(pltpu.get_tpu_info().vmem_capacity_bytes)
    except Exception:
        return 64 * 1024 * 1024  # conservative (v7x-sized) default


# ----------------------------------------------------------------------------
# Pallas kernel:  out[b] = W @ patches[b] + bias   (tiled, f32 accumulator)
# Grid = (B, M_pad//tm, L_pad//tn, K_pad//tk); K (reduction) is innermost.
# ----------------------------------------------------------------------------
def _matmul_bias_kernel(w_ref, x_ref, b_ref, o_ref, acc_ref):
    # w_ref  : (tm, tk)     weight tile              (compute dtype)
    # x_ref  : (1, tk, tn)  im2col patch tile        (compute dtype)
    # b_ref  : (tm, 1)      bias column, float32
    # o_ref  : (1, tm, tn)  output tile
    # acc_ref: (tm, tn)     float32 accumulator, persists across the K axis
    @pl.when(pl.program_id(3) == 0)
    def _():
        acc_ref[...] = jnp.zeros_like(acc_ref)

    acc_ref[...] += jnp.dot(w_ref[...], x_ref[0, :, :],
                            preferred_element_type=jnp.float32)

    @pl.when(pl.program_id(3) == pl.num_programs(3) - 1)
    def _():
        o_ref[0, :, :] = (acc_ref[...] + b_ref[...]).astype(o_ref.dtype)


def _plan_tiles(M, K, L, B):
    """Generation-aware tile sizes.  Full-extent blocks (no padding) are used
    whenever a dimension fits a single block; only oversized dims are tiled."""
    vmem_cap = _vmem_capacity_bytes()
    big_vmem = vmem_cap >= 100 * 1024 * 1024       # v5e/v6e: 128 MiB; v7x: 64 MiB
    tn_cap = 2048 if big_vmem else 1024
    tk_cap = 2048 if big_vmem else 1024

    # M = C_out (sublanes of LHS / output).
    if M <= 256:
        tm, M_pad = M, M
    else:
        tm, M_pad = 256, _round_up(M, 256)

    # K contraction: keep full-extent blocks (no zero-pad of the contraction).
    if K <= tk_cap:
        tk, K_pad = K, K
    else:
        tk, K_pad = 512, _round_up(K, 512)

    # L = H_out * W_out (lanes).
    if L <= tn_cap:
        tn, L_pad = L, L
    else:
        tn, L_pad = tn_cap, _round_up(L, tn_cap)

    # v7x has 2 TensorCores: keep at least 2 parallel grid tiles when possible.
    if B * (M_pad // tm) * (L_pad // tn) < 2 and L > 128:
        tn = _round_up(_cdiv(L, 2), 128)
        L_pad = _round_up(L, tn)

    vmem_limit = min(vmem_cap * 3 // 4, 100 * 1024 * 1024)
    return tm, tk, tn, M_pad, K_pad, L_pad, vmem_limit


def _conv_matmul_pallas(w2d, patches, bias_col, out_dtype):
    """w2d: (C_out, K), patches: (B, K, L), bias_col: (C_out, 1) -> (B, C_out, L)."""
    M, K = w2d.shape
    B, K2, L = patches.shape
    assert K == K2
    tm, tk, tn, M_pad, K_pad, L_pad, vmem_limit = _plan_tiles(M, K, L, B)

    # Zero-pad only when a dim is actually tiled (zeros contribute nothing to
    # the contraction).  In the common case the big patch tensor is consumed
    # as-is with full-extent K / L blocks.
    if (M_pad, K_pad) != (M, K):
        w2d = jnp.pad(w2d, ((0, M_pad - M), (0, K_pad - K)))
    if M_pad != M:
        bias_col = jnp.pad(bias_col, ((0, M_pad - M), (0, 0)))
    if (K_pad, L_pad) != (K, L):
        patches = jnp.pad(patches, ((0, 0), (0, K_pad - K), (0, L_pad - L)))

    op_bytes = jnp.dtype(w2d.dtype).itemsize
    flops = 2 * B * M_pad * K_pad * L_pad
    bytes_accessed = (M_pad * K_pad * op_bytes
                      + B * K_pad * L_pad * op_bytes
                      + B * M_pad * L_pad * jnp.dtype(out_dtype).itemsize)

    grid = (B, M_pad // tm, L_pad // tn, K_pad // tk)
    out = pl.pallas_call(
        _matmul_bias_kernel,
        out_shape=jax.ShapeDtypeStruct((B, M_pad, L_pad), out_dtype),
        grid_spec=pltpu.PrefetchScalarGridSpec(
            num_scalar_prefetch=0,
            grid=grid,
            in_specs=[
                pl.BlockSpec((tm, tk), lambda b, i, l, k: (i, k)),        # weight
                pl.BlockSpec((1, tk, tn), lambda b, i, l, k: (b, k, l)),  # patches
                pl.BlockSpec((tm, 1), lambda b, i, l, k: (i, 0)),         # bias
            ],
            out_specs=pl.BlockSpec((1, tm, tn), lambda b, i, l, k: (b, i, l)),
            scratch_shapes=[pltpu.VMEM((tm, tn), jnp.float32)],
        ),
        compiler_params=pltpu.CompilerParams(
            dimension_semantics=("parallel", "parallel", "parallel", "arbitrary"),
            vmem_limit_bytes=vmem_limit),
        cost_estimate=pl.CostEstimate(
            flops=flops, transcendentals=0, bytes_accessed=bytes_accessed),
    )(w2d, patches, bias_col)
    return out[:, :M, :L]


# ----------------------------------------------------------------------------
# im2col (torch.nn.functional.unfold semantics) laid out as (B, K, L) with the
# K axis ordered (kh, kw, c); the weight is permuted to the same order, so the
# contraction is identical to torch's (c, kh, kw) ordering.
# ----------------------------------------------------------------------------
def _im2col(x, kernel_size, stride, padding, dilation):
    B, C, H, W = x.shape
    kh, kw = kernel_size
    sh, sw = stride
    ph, pw = padding
    dh, dw = dilation
    H_out = (H + 2 * ph - dh * (kh - 1) - 1) // sh + 1
    W_out = (W + 2 * pw - dw * (kw - 1) - 1) // sw + 1

    x_pad = jnp.pad(x, ((0, 0), (0, 0), (ph, ph), (pw, pw)))
    taps = []
    for i in range(kh):
        for j in range(kw):
            h0 = i * dh
            w0 = j * dw
            taps.append(x_pad[:, :,
                              h0:h0 + (H_out - 1) * sh + 1:sh,
                              w0:w0 + (W_out - 1) * sw + 1:sw])
    # (B, kh*kw, C, Ho, Wo) -> (B, K, L); the tap axis is stacked directly
    # next to batch, so the reshape is free (no extra transpose pass).
    patches = jnp.stack(taps, axis=1).reshape(B, C * kh * kw, H_out * W_out)
    return patches, H_out, W_out


@functools.partial(jax.jit, static_argnames=(
    "kernel_size", "stride", "padding", "dilation", "bias_mode", "compute_dtype"))
def _conv2d_forward(x, weight, bias, *, kernel_size, stride, padding,
                    dilation, bias_mode, compute_dtype):
    B = x.shape[0]
    C_out, C_in, kh, kw = weight.shape
    K = C_in * kh * kw

    patches, H_out, W_out = _im2col(x, kernel_size, stride, padding, dilation)
    # (kh, kw, c) K-ordering to match _im2col.
    w2d = jnp.transpose(weight, (0, 2, 3, 1)).reshape(C_out, K)

    # Optional bf16 operands (MXU native); the f32 accumulator is kept either way.
    w2d = w2d.astype(compute_dtype)
    patches = patches.astype(compute_dtype)

    if bias_mode:
        bias_col = bias.reshape(C_out, 1).astype(jnp.float32)
    else:
        bias_col = jnp.zeros((C_out, 1), jnp.float32)

    out = _conv_matmul_pallas(w2d, patches, bias_col, x.dtype)   # (B, C_out, L)
    return out.reshape(B, C_out, H_out, W_out)


# ----------------------------------------------------------------------------
# Conv2d module (forward only), mirroring the PyTorch reference
# ----------------------------------------------------------------------------
class Conv2dPallas:
    def __init__(self, in_channels, out_channels, kernel_size, stride=1,
                 padding=0, dilation=1, bias=True, key=None,
                 compute_dtype=jnp.float32):
        as_pair = lambda v: (v, v) if isinstance(v, int) else tuple(v)
        self.in_channels = in_channels
        self.out_channels = out_channels
        self.kernel_size = as_pair(kernel_size)
        self.stride = as_pair(stride)
        self.padding = as_pair(padding)
        self.dilation = as_pair(dilation)
        self.bias_mode = bias
        self.compute_dtype = compute_dtype

        if key is None:
            key = jax.random.PRNGKey(0)
        kw_, kb_ = jax.random.split(key)
        n = in_channels * self.kernel_size[0] * self.kernel_size[1]
        std = n ** (-0.5)
        # Deterministic init matching the module's uniform(-std, std) scheme.
        self.weight = jax.random.uniform(
            kw_, (out_channels, in_channels, *self.kernel_size),
            minval=-std, maxval=std, dtype=jnp.float32)
        self.bias = jax.random.uniform(
            kb_, (out_channels,), minval=-std, maxval=std, dtype=jnp.float32)

    def __call__(self, x):
        return self.forward(x)

    def forward(self, x):
        return _conv2d_forward(
            x, self.weight, self.bias,
            kernel_size=self.kernel_size, stride=self.stride,
            padding=self.padding, dilation=self.dilation,
            bias_mode=self.bias_mode, compute_dtype=self.compute_dtype)


# ----------------------------------------------------------------------------
# Reference (pure JAX) for correctness check
# ----------------------------------------------------------------------------
def _reference_conv(x, weight, bias, stride, padding, dilation):
    out = jax.lax.conv_general_dilated(
        x, weight,
        window_strides=stride,
        padding=[(padding[0], padding[0]), (padding[1], padding[1])],
        rhs_dilation=dilation,
        dimension_numbers=("NCHW", "OIHW", "NCHW"))
    return out + bias.reshape(1, -1, 1, 1)


if __name__ == "__main__":
    key = jax.random.PRNGKey(0)
    kx, kp1, kp2 = jax.random.split(key, 3)

    B, C_in, H, W = 2, 4, 16, 16
    C_out, ksize = 8, 3

    x = jax.random.normal(kx, (B, C_in, H, W), dtype=jnp.float32)

    # Config 1: plain valid conv (stride=1, padding=0, dilation=1), f32.
    conv = Conv2dPallas(C_in, C_out, ksize, stride=1, padding=0, dilation=1,
                        bias=True, key=kp1)
    out = jax.block_until_ready(conv(x))
    ref = _reference_conv(x, conv.weight, conv.bias,
                          conv.stride, conv.padding, conv.dilation)
    assert out.shape == (B, C_out, 14, 14), out.shape
    assert jnp.allclose(out, ref, atol=1e-4, rtol=1e-4), \
        float(jnp.max(jnp.abs(out - ref)))

    # Config 2: strided + padded + dilated conv, f32.
    conv2 = Conv2dPallas(C_in, C_out, ksize, stride=2, padding=1, dilation=2,
                         bias=True, key=kp2)
    out2 = jax.block_until_ready(conv2(x))
    ref2 = _reference_conv(x, conv2.weight, conv2.bias,
                           conv2.stride, conv2.padding, conv2.dilation)
    assert out2.shape == (B, C_out, 7, 7), out2.shape
    assert jnp.allclose(out2, ref2, atol=1e-4, rtol=1e-4), \
        float(jnp.max(jnp.abs(out2 - ref2)))

    # Config 3: bf16 operands (MXU-native) with f32 accumulator; same weights
    # as config 1, compared against the f32 reference with a looser tolerance.
    conv_bf = Conv2dPallas(C_in, C_out, ksize, stride=1, padding=0, dilation=1,
                           bias=True, key=kp1, compute_dtype=jnp.bfloat16)
    out_bf = jax.block_until_ready(conv_bf(x))
    assert out_bf.shape == (B, C_out, 14, 14), out_bf.shape
    assert jnp.allclose(out_bf, ref, atol=5e-2, rtol=5e-2), \
        float(jnp.max(jnp.abs(out_bf - ref)))

    print("KERNEL_OK")
</pallas_src>

<mosaic_0001>
module attributes {stable_mosaic.version = 11 : i64} {
  func.func @_matmul_bias_kernel(%arg0: i32, %arg1: i32, %arg2: i32, %arg3: i32, %arg4: memref<8x36xf32, #tpu.memory_space<vmem>>, %arg5: memref<1x36x196xf32, #tpu.memory_space<vmem>>, %arg6: memref<8x1xf32, #tpu.memory_space<vmem>>, %arg7: memref<1x8x196xf32, #tpu.memory_space<vmem>>, %arg8: memref<8x196xf32, #tpu.memory_space<vmem>>) attributes {dimension_semantics = [#tpu.dimension_semantics<parallel>, #tpu.dimension_semantics<parallel>, #tpu.dimension_semantics<parallel>, #tpu.dimension_semantics<arbitrary>], iteration_bounds = array<i64: 2, 1, 1, 1>, scalar_prefetch = 0 : i64, scratch_operands = 1 : i64, tpu.core_type = #tpu.core_type<tc>, window_params = [{transform_indices = @transform_0, window_bounds = array<i64: 8, 36>}, {transform_indices = @transform_1, window_bounds = array<i64: 1, 36, 196>}, {transform_indices = @transform_2, window_bounds = array<i64: 8, 1>}, {transform_indices = @transform_3, window_bounds = array<i64: 1, 8, 196>}]} {
    %c0_i32 = arith.constant 0 : i32
    %0 = arith.cmpi eq, %arg3, %c0_i32 : i32
    %1 = arith.extui %0 : i1 to i32
    %c0_i32_0 = arith.constant 0 : i32
    %2 = arith.cmpi ne, %1, %c0_i32_0 : i32
    scf.if %2 {
      %cst_11 = arith.constant 0.000000e+00 : f32
      %13 = vector.broadcast %cst_11 : f32 to vector<8x196xf32>
      %c0_12 = arith.constant 0 : index
      %c0_13 = arith.constant 0 : index
      %14 = vector.load %arg8[%c0_12, %c0_13] : memref<8x196xf32, #tpu.memory_space<vmem>>, vector<8x196xf32>
      tpu.vector_store %arg8[%c0_12, %c0_13], %13 {strides = array<i32>} : memref<8x196xf32, #tpu.memory_space<vmem>>, vector<8x196xf32>,
    } else {
    }
    %c0 = arith.constant 0 : index
    %c0_1 = arith.constant 0 : index
    %3 = vector.load %arg8[%c0, %c0_1] : memref<8x196xf32, #tpu.memory_space<vmem>>, vector<8x196xf32>
    %c0_2 = arith.constant 0 : index
    %c0_3 = arith.constant 0 : index
    %4 = vector.load %arg4[%c0_2, %c0_3] : memref<8x36xf32, #tpu.memory_space<vmem>>, vector<8x36xf32>
    %c0_4 = arith.constant 0 : index
    %c0_5 = arith.constant 0 : index
    %c0_6 = arith.constant 0 : index
    %5 = vector.load %arg5[%c0_4, %c0_5, %c0_6] : memref<1x36x196xf32, #tpu.memory_space<vmem>>, vector<1x36x196xf32>
    %6 = vector.shape_cast %5 : vector<1x36x196xf32> to vector<36x196xf32>
    %cst = arith.constant dense<0.000000e+00> : vector<8x196xf32>
    %7 = tpu.matmul %4, %6, %cst {dimension_numbers = #tpu.dot_dimension_numbers<[1], [0], [0], [1], [0, 0, 1, 1], [], []>} : vector<8x36xf32>, vector<36x196xf32>, vector<8x196xf32> -> vector<8x196xf32>
    %8 = arith.addf %3, %7 : vector<8x196xf32>
    %c0_7 = arith.constant 0 : index
    %c0_8 = arith.constant 0 : index
    %9 = vector.load %arg8[%c0_7, %c0_8] : memref<8x196xf32, #tpu.memory_space<vmem>>, vector<8x196xf32>
    tpu.vector_store %arg8[%c0_7, %c0_8], %8 {strides = array<i32>} : memref<8x196xf32, #tpu.memory_space<vmem>>, vector<8x196xf32>,
    %c0_i32_9 = arith.constant 0 : i32
    %10 = arith.cmpi eq, %arg3, %c0_i32_9 : i32
    %11 = arith.extui %10 : i1 to i32
    %c0_i32_10 = arith.constant 0 : i32
    %12 = arith.cmpi ne, %11, %c0_i32_10 : i32
    scf.if %12 {
      %c0_11 = arith.constant 0 : index
      %c0_12 = arith.constant 0 : index
      %13 = vector.load %arg8[%c0_11, %c0_12] : memref<8x196xf32, #tpu.memory_space<vmem>>, vector<8x196xf32>
      %c0_13 = arith.constant 0 : index
      %c0_14 = arith.constant 0 : index
      %14 = vector.load %arg6[%c0_13, %c0_14] : memref<8x1xf32, #tpu.memory_space<vmem>>, vector<8x1xf32>
      %15 = vector.broadcast %14 : vector<8x1xf32> to vector<8x196xf32>
      %16 = arith.addf %13, %15 : vector<8x196xf32>
      %c0_15 = arith.constant 0 : index
      %c0_16 = arith.constant 0 : index
      %c0_17 = arith.constant 0 : index
      %17 = vector.load %arg7[%c0_15, %c0_16, %c0_17] : memref<1x8x196xf32, #tpu.memory_space<vmem>>, vector<1x8x196xf32>
      %18 = vector.shape_cast %17 : vector<1x8x196xf32> to vector<8x196xf32>
      %19 = vector.shape_cast %16 : vector<8x196xf32> to vector<1x8x196xf32>
      tpu.vector_store %arg7[%c0_15, %c0_16, %c0_17], %19 {strides = array<i32>} : memref<1x8x196xf32, #tpu.memory_space<vmem>>, vector<1x8x196xf32>,
    } else {
    }
    return
  }
  func.func @transform_0(%arg0: i32, %arg1: i32, %arg2: i32, %arg3: i32) -> (i32, i32) {
    %c0_i32 = arith.constant 0 : i32
    return %arg1, %arg3 : i32, i32
  }
  func.func @transform_1(%arg0: i32, %arg1: i32, %arg2: i32, %arg3: i32) -> (i32, i32, i32) {
    %c0_i32 = arith.constant 0 : i32
    return %arg0, %arg3, %arg2 : i32, i32, i32
  }
  func.func @transform_2(%arg0: i32, %arg1: i32, %arg2: i32, %arg3: i32) -> (i32, i32) {
    %c0_i32 = arith.constant 0 : i32
    %c0_i32_0 = arith.constant 0 : i32
    return %arg1, %c0_i32 : i32, i32
  }
  func.func @transform_3(%arg0: i32, %arg1: i32, %arg2: i32, %arg3: i32) -> (i32, i32, i32) {
    %c0_i32 = arith.constant 0 : i32
    return %arg0, %arg1, %arg2 : i32, i32, i32
  }
}

</mosaic_0001>

<llo_original>
// kernel: _conv2d_forward.1
$region0: #{_conv2d_forward.1}
  #allocation0 [shape = 'u32[]', space=smem, size = 0x4, offset = 0x4, fixed_abs, tag = 'smem constant byte address 0x4 - core index']
  #allocation1 [shape = 'u32[144,128]{1,0:T(1,128)}', space=vmem, size = 0x12000, scoped, tag = 'internal scratch']
  #allocation2 [shape = 'f32[8,196]{1,0:T(8,128)}', space=vmem, size = 0x2000, scoped, tag = 'scratch operand']
  %s0 = inlined_call_operand.vmem [shape: f32[8,36], index: 0, kind: input, shape index: {}]
  %s1 = inlined_call_operand.vmem [shape: f32[2,36,196], index: 1, kind: input, shape index: {}]
  %s2 = inlined_call_operand.vmem [shape: f32[8,1], index: 2, kind: input, shape index: {}]
  %s3 = inlined_call_operand.vmem [shape: f32[2,8,196], index: 3, kind: output, shape index: {}]
  %s4 = sld [smem:[#allocation0]]
  $region53: #{_conv2d_forward.1} parent=0
    _
  %s6 = ssub.s32 1, %s4
  %s7 = scalar_select 0, %s6, %s4
  loop: start=0, step=1, limit=4
  $region2: #{_conv2d_forward.1} parent=0 // loop_pre_header
    _
  $region3: #{_conv2d_forward.1} parent=0 // loop_header
    %s9 = sphi 0, %s13
    %p10 = scmp.ge.s32.totalorder %s9, 4
    %s16 = sphi 0, %s42
    %s17 = sphi 0, %s38
    %s18 = sphi 0, %s34
    %s19 = sphi 0, %s30
    %s20 = sphi 0, %s16
    %s21 = sphi 0, %s17
    %s22 = sphi 0, %s18
    %s23 = sphi 0, %s19
    %s24 = sphi 0, %s20
    %s25 = sphi 0, %s21
    %s26 = sphi 0, %s22
    %s27 = sphi 0, %s23
    %s47 = sphi 0, %s49
    %s50 = sphi 0, %s47
    %s51 = sphi 0, %s50
    %s67 = sphi 0, %s51
    %s77 = sphi 0, %s79
    %s80 = sphi 0, %s77
    %s81 = sphi 0, %s80
    %s97 = sphi 0, %s81
    %s103 = sphi 0, %s105
    %s106 = sphi 0, %s103
    %s107 = sphi 0, %s106
    %s123 = sphi 0, %s107
    %s133 = sphi 0, %s135
    %s136 = sphi 0, %s133
    %s137 = sphi 0, %s136
    %s153 = sphi 0, %s137
  $region4: #{_conv2d_forward.1} parent=0 // loop_header_branch
    %12 = sbr.rel (%p10) target = $region8
  $region5: #{_conv2d_forward.1} parent=0 // loop_body
    %s14 = ssub.s32 %s9, 1
    %s15 = ssub.s32 %s9, 2
    %s28 = sadd.s32 1, %s19
    %p29 = scmp.ge.s32.totalorder %s28, 1
    %s30 = scalar_select %p29, 0, %s28
    %s31 = sadd.s32 1, %s18
    %s32 = scalar_select %p29, %s31, %s18
    %p33 = scmp.ge.s32.totalorder %s32, 1
    %s34 = scalar_select %p33, 0, %s32
    %s35 = sadd.s32 1, %s17
    %s36 = scalar_select %p33, %s35, %s17
    %p37 = scmp.ge.s32.totalorder %s36, 1
    %s38 = scalar_select %p37, 0, %s36
    %s39 = sadd.s32 1, %s16
    %s40 = scalar_select %p37, %s39, %s16
    %p41 = scmp.ge.s32.totalorder %s40, 2
    %s42 = scalar_select %p41, 0, %s40
    %s43 = ssub.s32 %s17, %s38
    %s44 = ssub.s32 %s19, %s30
    %s45 = sor.u32 %s43, %s44
    %p46 = scmp.eq.s32.totalorder %s45, 0
    %s48 = sadd.s32 %s47, 1
    %s49 = scalar_select %p46, %s47, %s48
    %p52 = pneg %p46
    %p53 = scmp.eq.s32.totalorder %s9, 1
    %p54 = por %p52, %p53
    %p55 = scmp.ne.s32.totalorder %s47, %s50
    %p56 = scmp.eq.s32.totalorder %s9, 0
    %p57 = por %p55, %p56
    %p58 = scmp.ne.s32.totalorder %s47, %s50
    %p59 = scmp.eq.s32.totalorder %s14, 1
    %p60 = por %p58, %p59
    %p61 = scmp.ne.s32.totalorder %s50, %s51
    %p62 = scmp.eq.s32.totalorder %s14, 0
    %p63 = por %p61, %p62
    %p64 = scmp.ne.s32.totalorder %s50, %s51
    %p65 = scmp.eq.s32.totalorder %s15, 1
    %p66 = por %p64, %p65
    %p68 = scmp.ne.s32.totalorder %s51, %s67
    %p69 = scmp.eq.s32.totalorder %s15, 0
    %p70 = por %p68, %p69
    %s71 = ssub.s32 %s16, %s42
    %s72 = ssub.s32 %s19, %s30
    %s73 = sor.u32 %s71, %s72
    %s74 = ssub.s32 %s18, %s34
    %s75 = sor.u32 %s73, %s74
    %p76 = scmp.eq.s32.totalorder %s75, 0
    %s78 = sadd.s32 %s77, 1
    %s79 = scalar_select %p76, %s77, %s78
    %p82 = pneg %p76
    %p83 = scmp.eq.s32.totalorder %s9, 1
    %p84 = por %p82, %p83
    %p85 = scmp.ne.s32.totalorder %s77, %s80
    %p86 = scmp.eq.s32.totalorder %s9, 0
    %p87 = por %p85, %p86
    %p88 = scmp.ne.s32.totalorder %s77, %s80
    %p89 = scmp.eq.s32.totalorder %s14, 1
    %p90 = por %p88, %p89
    %p91 = scmp.ne.s32.totalorder %s80, %s81
    %p92 = scmp.eq.s32.totalorder %s14, 0
    %p93 = por %p91, %p92
    %p94 = scmp.ne.s32.totalorder %s80, %s81
    %p95 = scmp.eq.s32.totalorder %s15, 1
    %p96 = por %p94, %p95
    %p98 = scmp.ne.s32.totalorder %s81, %s97
    %p99 = scmp.eq.s32.totalorder %s15, 0
    %p100 = por %p98, %p99
    %s101 = ssub.s32 %s17, %s38
    %p102 = scmp.eq.s32.totalorder %s101, 0
    %s104 = sadd.s32 %s103, 1
    %s105 = scalar_select %p102, %s103, %s104
    %p108 = pneg %p102
    %p109 = scmp.eq.s32.totalorder %s9, 1
    %p110 = por %p108, %p109
    %p111 = scmp.ne.s32.totalorder %s103, %s106
    %p112 = scmp.eq.s32.totalorder %s9, 0
    %p113 = por %p111, %p112
    %p114 = scmp.ne.s32.totalorder %s103, %s106
    %p115 = scmp.eq.s32.totalorder %s14, 1
    %p116 = por %p114, %p115
    %p117 = scmp.ne.s32.totalorder %s106, %s107
    %p118 = scmp.eq.s32.totalorder %s14, 0
    %p119 = por %p117, %p118
    %p120 = scmp.ne.s32.totalorder %s106, %s107
    %p121 = scmp.eq.s32.totalorder %s15, 1
    %p122 = por %p120, %p121
    %p124 = scmp.ne.s32.totalorder %s107, %s123
    %p125 = scmp.eq.s32.totalorder %s15, 0
    %p126 = por %p124, %p125
    %s127 = ssub.s32 %s16, %s42
    %s128 = ssub.s32 %s17, %s38
    %s129 = sor.u32 %s127, %s128
    %s130 = ssub.s32 %s18, %s34
    %s131 = sor.u32 %s129, %s130
    %p132 = scmp.eq.s32.totalorder %s131, 0
    %s134 = sadd.s32 %s133, 1
    %s135 = scalar_select %p132, %s133, %s134
    %p138 = pneg %p132
    %p139 = scmp.eq.s32.totalorder %s9, 1
    %p140 = por %p138, %p139
    %p141 = scmp.ne.s32.totalorder %s133, %s136
    %p142 = scmp.eq.s32.totalorder %s9, 0
    %p143 = por %p141, %p142
    %p144 = scmp.ne.s32.totalorder %s133, %s136
    %p145 = scmp.eq.s32.totalorder %s14, 1
    %p146 = por %p144, %p145
    %p147 = scmp.ne.s32.totalorder %s136, %s137
    %p148 = scmp.eq.s32.totalorder %s14, 0
    %p149 = por %p147, %p148
    %p150 = scmp.ne.s32.totalorder %s136, %s137
    %p151 = scmp.eq.s32.totalorder %s15, 1
    %p152 = por %p150, %p151
    %p154 = scmp.ne.s32.totalorder %s137, %s153
    %p155 = scmp.eq.s32.totalorder %s15, 0
    %p156 = por %p154, %p155
    %p157 = scmp.le.s32.totalorder 1, %s9
    %p158 = scmp.lt.s32.totalorder %s9, 3
    %p159 = pnand %p157, %p158
    %p160 = pneg %p159
    // Predicated region
    $region9: #{_conv2d_forward.1} parent=5 // pred_check
      _
    $region10: #{_conv2d_forward.1} parent=5 // pred_check_branch
      %162 = sbr.rel (%p159) target = $region12
    $region11: #{_conv2d_forward.1} parent=5 // pred_region
      %s163 = ssub.s32 %s9, 1
      // Predicated region
      $region13: #{_conv2d_forward.1} parent=11 // pred_check
        %p164 = pneg %p63
      $region14: #{_conv2d_forward.1} parent=11 // pred_check_branch
        %166 = sbr.rel (%p164) target = $region16
      $region15: #{_conv2d_forward.1} parent=11 // pred_region
        %p167 = scmp.lt.s32.totalorder %s21, 0
        %s168 = scalar_select %p167, %s21, 0
        %p169 = scmp.lt.s32.totalorder %s23, 0
        %s170 = scalar_select %p169, %s23, 0
        %s171 = sadd.s32 %s170, %s168
        %s172 = smul.addr %s171, 8
        %s173 = scalar_lea.vmem %s0, %s172
      $region16: #{_conv2d_forward.1} parent=11 // pred_fallthru
        _
      // Predicated region
      $region17: #{_conv2d_forward.1} parent=11 // pred_check
        %p174 = pneg %p119
      $region18: #{_conv2d_forward.1} parent=11 // pred_check_branch
        %176 = sbr.rel (%p174) target = $region20
      $region19: #{_conv2d_forward.1} parent=11 // pred_region
        %p177 = scmp.lt.s32.totalorder %s21, 0
        %s178 = scalar_select %p177, %s21, 0
        %s179 = smul.addr %s178, 8
        %s180 = scalar_lea.vmem %s2, %s179
      $region20: #{_conv2d_forward.1} parent=11 // pred_fallthru
        _
    $region12: #{_conv2d_forward.1} parent=5 // pred_fallthru
      _
    %p181 = scmp.lt.s32.totalorder %s9, 2
    // Predicated region
    $region21: #{_conv2d_forward.1} parent=5 // pred_check
      %p182 = pneg %p181
    $region22: #{_conv2d_forward.1} parent=5 // pred_check_branch
      %184 = sbr.rel (%p182) target = $region24
    $region23: #{_conv2d_forward.1} parent=5 // pred_region
      // Predicated region
      $region25: #{_conv2d_forward.1} parent=23 // pred_check
        %p185 = pneg %p87
      $region26: #{_conv2d_forward.1} parent=23 // pred_check_branch
        %187 = sbr.rel (%p185) target = $region28
      $region27: #{_conv2d_forward.1} parent=23 // pred_region
        %s188 = smul.u32 5, %s19
        %s189 = smul.u32 2, %s18
        %p190 = scmp.lt.s32.totalorder %s16, 1
        %s191 = scalar_select %p190, %s16, 1
        %p192 = scmp.lt.s32.totalorder %s188, 4
        %s193 = scalar_select %p192, %s188, 4
        %p194 = scmp.lt.s32.totalorder %s189, 1
        %s195 = scalar_select %p194, %s189, 1
        %s196 = smul.addr %s193, 2
        %s197 = sadd.s32 %s195, %s196
        %s198 = smul.addr %s191, 10
        %s199 = sadd.s32 %s197, %s198
        %s200 = smul.addr %s199, 8
        %s201 = scalar_lea.vmem %s1, %s200
        %s202 = smul.u32 5, %s19
        %s203 = smul.u32 2, %s18
      $region28: #{_conv2d_forward.1} parent=23 // pred_fallthru
        _
    $region24: #{_conv2d_forward.1} parent=5 // pred_fallthru
      _
    %p204 = scmp.le.s32.totalorder 1, %s9
    %p205 = scmp.lt.s32.totalorder %s9, 3
    %p206 = pnand %p204, %p205
    %p207 = pneg %p206
    // Predicated region
    $region29: #{_conv2d_forward.1} parent=5 // pred_check
      _
    $region30: #{_conv2d_forward.1} parent=5 // pred_check_branch
      %209 = sbr.rel (%p206) target = $region32
    $region31: #{_conv2d_forward.1} parent=5 // pred_region
      %s210 = ssub.s32 %s9, 1
      %p211 = scmp.lt.s32.totalorder %s21, 0
      %s212 = scalar_select %p211, %s21, 0
      %p213 = scmp.lt.s32.totalorder %s23, 0
      %s214 = scalar_select %p213, %s23, 0
      %s215 = sadd.s32 %s214, %s212
      %s216 = smul.addr %s215, 8
      %s217 = scalar_lea.vmem %s0, %s216
      %p218 = pneg %p63
      %p219 = pneg %p60
      %s220 = smul.u32 5, %s23
      %s221 = smul.u32 2, %s22
      %p222 = scmp.lt.s32.totalorder %s20, 1
      %s223 = scalar_select %p222, %s20, 1
      %p224 = scmp.lt.s32.totalorder %s220, 4
      %s225 = scalar_select %p224, %s220, 4
      %p226 = scmp.lt.s32.totalorder %s221, 1
      %s227 = scalar_select %p226, %s221, 1
      %s228 = smul.addr %s225, 2
      %s229 = sadd.s32 %s227, %s228
      %s230 = smul.addr %s223, 10
      %s231 = sadd.s32 %s229, %s230
      %s232 = smul.addr %s231, 8
      %s233 = scalar_lea.vmem %s1, %s232
      %p234 = pneg %p93
      %p235 = pneg %p90
      %p236 = scmp.lt.s32.totalorder %s21, 0
      %s237 = scalar_select %p236, %s21, 0
      %s238 = smul.addr %s237, 8
      %s239 = scalar_lea.vmem %s2, %s238
      %p240 = pneg %p119
      %p241 = pneg %p116
      %p242 = pneg %p149
      %p243 = pneg %p146
      %s244 = smul.u32 2, %s22
      %p245 = scmp.lt.s32.totalorder %s20, 1
      %s246 = scalar_select %p245, %s20, 1
      %p247 = scmp.lt.s32.totalorder %s21, 0
      %s248 = scalar_select %p247, %s21, 0
      %p249 = scmp.lt.s32.totalorder %s244, 1
      %s250 = scalar_select %p249, %s244, 1
      %s251 = smul.addr %s248, 2
      %s252 = sadd.s32 %s250, %s251
      %s253 = smul.addr %s246, 2
      %s254 = sadd.s32 %s252, %s253
      %s255 = smul.addr %s254, 8
      %s256 = scalar_lea.vmem %s3, %s255
      %p257 = scmp.lt.s32.totalorder %s21, 0
      %s258 = scalar_select %p257, %s21, 0
      %p259 = scmp.lt.s32.totalorder %s23, 0
      %s260 = scalar_select %p259, %s23, 0
      %s261 = sadd.s32 %s260, %s258
      %s262 = smul.addr %s261, 8
      %s263 = scalar_lea.vmem %s0, %s262
      %s264 = smul.u32 5, %s23
      %s265 = smul.u32 2, %s22
      %p266 = scmp.lt.s32.totalorder %s20, 1
      %s267 = scalar_select %p266, %s20, 1
      %p268 = scmp.lt.s32.totalorder %s264, 4
      %s269 = scalar_select %p268, %s264, 4
      %p270 = scmp.lt.s32.totalorder %s265, 1
      %s271 = scalar_select %p270, %s265, 1
      %s272 = smul.addr %s269, 2
      %s273 = sadd.s32 %s271, %s272
      %s274 = smul.addr %s267, 10
      %s275 = sadd.s32 %s273, %s274
      %s276 = smul.addr %s275, 8
      %s277 = scalar_lea.vmem %s1, %s276
      %s278 = smul.u32 5, %s23
      %s279 = smul.u32 2, %s22
      %p280 = scmp.lt.s32.totalorder %s21, 0
      %s281 = scalar_select %p280, %s21, 0
      %s282 = smul.addr %s281, 8
      %s283 = scalar_lea.vmem %s2, %s282
      %s284 = smul.u32 2, %s22
      %p285 = scmp.lt.s32.totalorder %s20, 1
      %s286 = scalar_select %p285, %s20, 1
      %p287 = scmp.lt.s32.totalorder %s21, 0
      %s288 = scalar_select %p287, %s21, 0
      %p289 = scmp.lt.s32.totalorder %s284, 1
      %s290 = scalar_select %p289, %s284, 1
      %s291 = smul.addr %s288, 2
      %s292 = sadd.s32 %s290, %s291
      %s293 = smul.addr %s286, 2
      %s294 = sadd.s32 %s292, %s293
      %s295 = smul.addr %s294, 8
      %s296 = scalar_lea.vmem %s3, %s295
      %s297 = smul.u32 2, %s22
      %p298 = scmp.eq.s32.totalorder %s23, 0
      // Predicated region
      $region33: #{_conv2d_forward.1} parent=31 // pred_check
        %p299 = pneg %p298
      $region34: #{_conv2d_forward.1} parent=31 // pred_check_branch
        %301 = sbr.rel (%p299) target = $region36
      $region35: #{_conv2d_forward.1} parent=31 // pred_region
        %302 = vst [vmem:[#allocation2] sm:$0xff] 0.0
        %vm303 = vcmask 556032
        %304 = vst.msk [vmem:[#allocation2 + $0x8] sm:$0xff] %vm303, 0.0
      $region36: #{_conv2d_forward.1} parent=31 // pred_fallthru
        _
      %v305 = vld [vmem:[#allocation2] sm:$0xff]
      %v306 = vld [vmem:[#allocation2 + $0x8] sm:$0xff]
      %v307 = vld [vmem:[%s263] sm:$0xff]
      %v308 = vld [vmem:[%s277] sm:$0xff]
      %v309 = vld [vmem:[%s277 + $0x8] sm:$0xff]
      %v310 = vld [vmem:[%s277 + $0x10] sm:$0xff]
      %v311 = vld [vmem:[%s277 + $0x18] sm:$0xff]
      %v312 = vld [vmem:[%s277 + $0x20] sm:$0xff]
      %v313 = vld [vmem:[%s277 + $0x28] sm:$0xff]
      %v314 = vld [vmem:[%s277 + $0x30] sm:$0xff]
      %v315 = vld [vmem:[%s277 + $0x38] sm:$0xff]
      %v316 = vld [vmem:[%s277 + $0x40] sm:$0xf]
      %v317 = vld [vmem:[%s277 + $0x48] sm:$0xf]
      %vm318 = vcmask 293888
      %v320 = vsel %vm318, %v307, 0
      %vm322 = vcmask 1043456
      %v324 = vsel %vm322, %v316, 0
      %v327 = vsel %vm322, %v317, 0
      %329 = vmatprep.subr.mxu0 %v309
      %330 = vmatpush1.msra.mxu0 %v308
      %331 = vmatprep.subr.mxu0 %v311
      %332 = vmatpush1.msra.mxu0 %v310
      %333 = vmatprep.subr.mxu0 %v313
      %334 = vmatpush1.msra.mxu0 %v312
      %335 = vmatprep.subr.mxu0 %v315
      %336 = vmatpush1.msra.mxu0 %v314
      %337 = vmatprep.subr.mxu0 %v327
      %338 = vmatpush1.msra.mxu0 %v324
      %339 = vmatprep.subr.mxu0 0.0
      %340 = vmatpush1.msra.mxu0 0.0
      %341 = vmatprep.subr.mxu0 0.0
      %342 = vmatpush1.msra.mxu0 0.0
      %343 = vmatprep.subr.mxu0 0.0
      %344 = vmatpush1.msra.mxu0 0.0
      %345 = vmatprep.subr.mxu0 0.0
      %346 = vmatpush1.msra.mxu0 0.0
      %347 = vmatprep.subr.mxu0 0.0
      %348 = vmatpush1.msra.mxu0 0.0
      %349 = vmatprep.subr.mxu0 0.0
      %350 = vmatpush1.msra.mxu0 0.0
      %351 = vmatprep.subr.mxu0 0.0
      %352 = vmatpush1.msra.mxu0 0.0
      %353 = vmatprep.subr.mxu0 0.0
      %354 = vmatpush1.msra.mxu0 0.0
      %355 = vmatprep.subr.mxu0 0.0
      %356 = vmatpush1.msra.mxu0 0.0
      %357 = vmatprep.subr.mxu0 0.0
      %358 = vmatpush1.msra.mxu0 0.0
      %359 = vmatprep.subr.mxu0 0.0
      %360 = vmatpush1.msra.mxu0 0.0
      %361 = vmatprep.subr.mxu0 0.0
      %362 = vmatpush1.msra.mxu0 0.0
      %363 = vmatprep.subr.mxu0 0.0
      %364 = vmatpush1.msra.mxu0 0.0
      %365 = vmatprep.subr.mxu0 0.0
      %366 = vmatpush1.msra.mxu0 0.0
      %367 = vmatprep.subr.mxu0 0.0
      %368 = vmatpush1.msra.mxu0 0.0
      %369 = vmatprep.subr.mxu0 0.0
      %370 = vmatpush1.msra.mxu0 0.0
      %371 = vmatprep.subr.mxu0 0.0
      %372 = vmatpush1.msra.mxu0 0.0
      %373 = vmatprep.subr.mxu0 0.0
      %374 = vmatpush1.msra.mxu0 0.0
      %375 = vmatprep.subr.mxu0 0.0
      %376 = vmatpush1.msra.mxu0 0.0
      %377 = vmatprep.subr.mxu0 0.0
      %378 = vmatpush1.msra.mxu0 0.0
      %379 = vmatprep.subr.mxu0 0.0
      %380 = vmatpush1.msra.mxu0 0.0
      %381 = vmatprep.subr.mxu0 0.0
      %382 = vmatpush1.msra.mxu0 0.0
      %383 = vmatprep.subr.mxu0 0.0
      %384 = vmatpush1.msra.mxu0 0.0
      %385 = vmatprep.subr.mxu0 0.0
      %386 = vmatpush1.msra.mxu0 0.0
      %387 = vmatprep.subr.mxu0 0.0
      %388 = vmatpush1.msra.mxu0 0.0
      %389 = vmatprep.subr.mxu0 0.0
      %390 = vmatpush1.msra.mxu0 0.0
      %391 = vmatprep.subr.mxu0 0.0
      %392 = vmatpush1.msra.mxu0 0.0
      %393 = vmatprep.mubr.f32.mxu0 0.0
      %394 = vmatmul.mubr.f32.gmra.mrb[0].mxu0 %v320
      %v395 = vpop.f32.mrb[0].mxu0
      %v396 = vadd.f32 0.0, %v395
      %v397 = vpop.f32.mrb[0].mxu0
      %v398 = vadd.f32 0.0, %v397
      %399 = vdwg.mxu0
      %v400 = vadd.f32 %v305, %v396
      %v401 = vadd.f32 %v306, %v398
      %402 = vst [vmem:[#allocation2] sm:$0xff] %v400
      %vm403 = vcmask 556032
      %404 = vst.msk [vmem:[#allocation2 + $0x8] sm:$0xff] %vm403, %v401
      // Predicated region
      $region37: #{_conv2d_forward.1} parent=31 // pred_check
        %p405 = pneg %p298
      $region38: #{_conv2d_forward.1} parent=31 // pred_check_branch
        %407 = sbr.rel (%p405) target = $region40
      $region39: #{_conv2d_forward.1} parent=31 // pred_region
        %v408 = vld [vmem:[#allocation2] sm:$0xff]
        %v409 = vld [vmem:[#allocation2 + $0x8] sm:$0xff]
        %v410 = vld [vmem:[%s283] sm:$0xff]
        %412 = vset.pattern.permute.xlu0 0
        %413 = vperm.xlu0 %412, %v410
        %v414 = vpop.permute.xlu0 %413
        %v416 = vadd.f32 %v408, %v414
        %v417 = vadd.f32 %v409, %v414
        %418 = vst [vmem:[%s296] sm:$0xff] %v416
        %419 = vst.msk [vmem:[%s296 + $0x8] sm:$0xff] %vm403, %v417
      $region40: #{_conv2d_forward.1} parent=31 // pred_fallthru
        _
      %s420 = smul.u32 2, %s22
      %p421 = scmp.lt.s32.totalorder %s20, 1
      %s422 = scalar_select %p421, %s20, 1
      %p423 = scmp.lt.s32.totalorder %s21, 0
      %s424 = scalar_select %p423, %s21, 0
      %p425 = scmp.lt.s32.totalorder %s420, 1
      %s426 = scalar_select %p425, %s420, 1
      %s427 = smul.addr %s424, 2
      %s428 = sadd.s32 %s426, %s427
      %s429 = smul.addr %s422, 2
      %s430 = sadd.s32 %s428, %s429
      %s431 = smul.addr %s430, 8
      %s432 = scalar_lea.vmem %s3, %s431
      // Predicated region
      $region41: #{_conv2d_forward.1} parent=31 // pred_check
        %p433 = pneg %p146
      $region42: #{_conv2d_forward.1} parent=31 // pred_check_branch
        %435 = sbr.rel (%p433) target = $region44
      $region43: #{_conv2d_forward.1} parent=31 // pred_region
        %s436 = smul.u32 2, %s22
      $region44: #{_conv2d_forward.1} parent=31 // pred_fallthru
        _
    $region32: #{_conv2d_forward.1} parent=5 // pred_fallthru
      _
    %p437 = scmp.le.s32.totalorder 2, %s9
    // Predicated region
    $region45: #{_conv2d_forward.1} parent=5 // pred_check
      %p438 = pneg %p437
    $region46: #{_conv2d_forward.1} parent=5 // pred_check_branch
      %440 = sbr.rel (%p438) target = $region48
    $region47: #{_conv2d_forward.1} parent=5 // pred_region
      %s441 = ssub.s32 %s9, 2
      // Predicated region
      $region49: #{_conv2d_forward.1} parent=47 // pred_check
        %p442 = pneg %p152
      $region50: #{_conv2d_forward.1} parent=47 // pred_check_branch
        %444 = sbr.rel (%p442) target = $region52
      $region51: #{_conv2d_forward.1} parent=47 // pred_region
        %s445 = smul.u32 2, %s26
        %p446 = scmp.lt.s32.totalorder %s24, 1
        %s447 = scalar_select %p446, %s24, 1
        %p448 = scmp.lt.s32.totalorder %s25, 0
        %s449 = scalar_select %p448, %s25, 0
        %p450 = scmp.lt.s32.totalorder %s445, 1
        %s451 = scalar_select %p450, %s445, 1
        %s452 = smul.addr %s449, 2
        %s453 = sadd.s32 %s451, %s452
        %s454 = smul.addr %s447, 2
        %s455 = sadd.s32 %s453, %s454
        %s456 = smul.addr %s455, 8
        %s457 = scalar_lea.vmem %s3, %s456
      $region52: #{_conv2d_forward.1} parent=47 // pred_fallthru
        _
    $region48: #{_conv2d_forward.1} parent=5 // pred_fallthru
      _
  $region6: #{_conv2d_forward.1} parent=0 // loop_footer
    %s13 = sadd.s32 1, %s9
  $region7: #{_conv2d_forward.1} parent=0 // loop_footer_branch
    %8 = sbr.rel target = $region3
  $region8: #{_conv2d_forward.1} parent=0 // loop_exit
    _

</llo_original>
